<compile_context>
chip_gen: v7x
topology: tpu7x:2x2x1
jax: 0.10.0
libtpu: 0.0.40
codegen_flags: <defaults>
</compile_context>

<pallas_src>
import numpy as np
import jax
import jax.numpy as jnp
from jax.experimental import pallas as pl
from jax.experimental.pallas import tpu as pltpu

H_IN, W_IN = 4, 4            # implied by CONV_FLOPS=72 / LINEAR_FLOPS=108
KH, KW = 2, 2
H_OUT, W_OUT = H_IN - KH + 1, W_IN - KW + 1      # 3, 3
FC_IN, FC_OUT = 3, 6
IN_FLAT = H_IN * W_IN                            # 16
OUT_FLAT = H_OUT * FC_OUT                        # 18
PACK = 8                                         # batch elements packed per 128-lane row
IN_PACK = PACK * IN_FLAT                         # 128
OUT_PACK = PACK * OUT_FLAT                       # 144

R_TILE_MAX = 4096                                # rows/step = 32768 batch elements/step


def _round_up(x, m):
    return (x + m - 1) // m * m


def conv_linear_kernel(w_ref, b_ref, x_ref, o_ref):
    # w_ref: [128, 144] block-diagonal folded conv∘fc weight (VMEM-resident across grid)
    # b_ref: [1, 144]   folded bias, tiled over the 8 packed batch elements
    # x_ref: [r_tile, 128]  8 batch elements (16 features each) per row
    # o_ref: [r_tile, 144]  8 batch elements (18 outputs each) per row
    o_ref[...] = (
        jnp.dot(x_ref[...], w_ref[...], preferred_element_type=jnp.float32)
        + b_ref[...]
    ).astype(o_ref.dtype)


def _build_scatter_const():
    # S[row, h, w, kh, kw] = 1.0 where row == (h+kh)*W_IN + (w+kw).
    # Host numpy constant: keeps the fold to a single einsum in the trace.
    S = np.zeros((IN_FLAT, H_OUT, W_OUT, KH, KW), np.float32)
    for h in range(H_OUT):
        for w in range(W_OUT):
            for kh in range(KH):
                for kw in range(KW):
                    S[(h + kh) * W_IN + (w + kw), h, w, kh, kw] = 1.0
    return S


_SCATTER = _build_scatter_const()


def fold_params(conv_w, conv_b, fc_w, fc_b):
    """Fold Conv2d(1,1,2,'valid') -> Linear(3,6) into one affine map
    x_flat[16] -> out_flat[18] (out index p = h*6 + n), then expand it
    block-diagonally for the 8-batch-elements-per-row packed layout."""
    cw = conv_w[0, 0].astype(jnp.float32)            # [2, 2]
    fwT = fc_w.T.astype(jnp.float32)                 # [3, 6]  (in x out)
    # M[row, h*6+n] = sum_{w,kh,kw} S[row,h,w,kh,kw] * cw[kh,kw] * fwT[w,n]
    M = jnp.einsum('rhwij,ij,wn->rhn', jnp.asarray(_SCATTER), cw, fwT)
    M = M.reshape(IN_FLAT, OUT_FLAT)                 # [16, 18]
    # Conv bias is added uniformly over the 3 w positions before the fc.
    b_comb = jnp.tile(conv_b[0].astype(jnp.float32) * fwT.sum(axis=0)
                      + fc_b.astype(jnp.float32), H_OUT)          # [18]
    eye = jnp.eye(PACK, dtype=jnp.float32)
    w_bd = (eye[:, None, :, None] * M[None, :, None, :]).reshape(IN_PACK, OUT_PACK)
    b_bd = jnp.tile(b_comb, PACK)[None, :]           # [1, 144]
    return w_bd, b_bd


def conv_linear_forward(x_nchw, conv_w, conv_b, fc_w, fc_b, *, r_tile_max=R_TILE_MAX):
    """x_nchw: [B, 1, 4, 4]; conv_w: [1, 1, 2, 2]; conv_b: [1];
       fc_w: [6, 3] (torch layout); fc_b: [6].  Returns [B, 1, 3, 6] float32."""
    B = x_nchw.shape[0]
    w_bd, b_bd = fold_params(conv_w, conv_b, fc_w, fc_b)

    x_flat = x_nchw.reshape(B, IN_FLAT).astype(jnp.float32)       # free reshape
    B8 = _round_up(B, PACK)
    if B8 != B:
        # Only remaining extra HBM pass; hit only when B % 8 != 0.
        x_flat = jnp.pad(x_flat, ((0, B8 - B), (0, 0)))
    R = B8 // PACK
    x_packed = x_flat.reshape(R, IN_PACK)            # free contiguous reshape: [R, 128]

    if R <= PACK:
        r_tile = R                                   # single block == full array dims
    else:
        # >= 2 grid steps when possible so ("parallel",) shards across v7x's 2 TCs.
        r_tile = min(r_tile_max, _round_up(pl.cdiv(R, 2), 8))
    grid = (pl.cdiv(R, r_tile),)
    # Partial last block is handled by Pallas: each output row depends only on
    # its own input row, and out-of-bounds rows are never written back to HBM.

    out_packed = pl.pallas_call(
        conv_linear_kernel,
        out_shape=jax.ShapeDtypeStruct((R, OUT_PACK), jnp.float32),
        grid_spec=pltpu.PrefetchScalarGridSpec(
            num_scalar_prefetch=0,
            grid=grid,
            in_specs=[
                pl.BlockSpec((IN_PACK, OUT_PACK), lambda i: (0, 0)),   # weight (resident)
                pl.BlockSpec((1, OUT_PACK), lambda i: (0, 0)),         # bias (resident)
                pl.BlockSpec((r_tile, IN_PACK), lambda i: (i, 0)),     # x tile
            ],
            out_specs=pl.BlockSpec((r_tile, OUT_PACK), lambda i: (i, 0)),
        ),
        compiler_params=pltpu.CompilerParams(
            dimension_semantics=("parallel",),
        ),
        cost_estimate=pl.CostEstimate(
            flops=2 * R * IN_PACK * OUT_PACK,
            transcendentals=0,
            bytes_accessed=4 * (R * (IN_PACK + OUT_PACK)
                                + IN_PACK * OUT_PACK + OUT_PACK),
        ),
    )(w_bd, b_bd, x_packed)

    out = out_packed.reshape(B8, OUT_FLAT)           # free contiguous reshape
    if B8 != B:
        out = out[:B]
    return out.reshape(B, 1, H_OUT, FC_OUT)          # [B, 1, 3, 6]


def reference_forward(x_nchw, conv_w, conv_b, fc_w, fc_b):
    """Pure-JAX reference matching PyTorch semantics (un-folded)."""
    x = x_nchw[:, 0, :, :].astype(jnp.float32)
    cw = conv_w[0, 0].astype(jnp.float32)
    y = jnp.zeros((x.shape[0], H_OUT, W_OUT), jnp.float32)
    for kh in range(KH):
        for kw in range(KW):
            y = y + x[:, kh:kh + H_OUT, kw:kw + W_OUT] * cw[kh, kw]
    y = y + conv_b[0]
    out = jnp.einsum('bhk,nk->bhn', y, fc_w.astype(jnp.float32)) + fc_b[None, None, :]
    return out[:, None, :, :]


if __name__ == "__main__":
    key = jax.random.PRNGKey(0)
    kx, kx2, kx3, kfw, kfb = jax.random.split(key, 5)

    # Deterministic params mirroring NNCF's create_conv(1, 1, 2, -1, -2):
    # weight filled with -1 plus identity, bias filled with -2.
    conv_w = (jnp.full((1, 1, KH, KW), -1.0, jnp.float32)
              + jnp.eye(KH, dtype=jnp.float32)[None, None, :, :])
    conv_b = jnp.full((1,), -2.0, jnp.float32)

    # nn.Linear(3, 6) params, deterministic via PRNGKey(0).
    fc_w = jax.random.normal(kfw, (FC_OUT, FC_IN), dtype=jnp.float32) * 0.5
    fc_b = jax.random.normal(kfb, (FC_OUT,), dtype=jnp.float32) * 0.1

    # Small case (spec-sized), B % 8 != 0 -> pad path, single grid step.
    B = 2
    x = jax.random.normal(kx, (B, 1, H_IN, W_IN), dtype=jnp.float32)
    out = jax.block_until_ready(conv_linear_forward(x, conv_w, conv_b, fc_w, fc_b))
    ref = jax.block_until_ready(reference_forward(x, conv_w, conv_b, fc_w, fc_b))
    assert out.shape == (B, 1, H_OUT, FC_OUT), out.shape
    assert jnp.allclose(out, ref, atol=1e-5, rtol=1e-5), "mismatch vs reference (B=2)"

    # B % 8 != 0, multi-step grid with a partial trailing block.
    B2 = 300
    x2 = jax.random.normal(kx2, (B2, 1, H_IN, W_IN), dtype=jnp.float32)
    out2 = jax.block_until_ready(conv_linear_forward(x2, conv_w, conv_b, fc_w, fc_b))
    ref2 = jax.block_until_ready(reference_forward(x2, conv_w, conv_b, fc_w, fc_b))
    assert out2.shape == (B2, 1, H_OUT, FC_OUT), out2.shape
    assert jnp.allclose(out2, ref2, atol=1e-4, rtol=1e-4), "mismatch vs reference (B=300)"

    # B % 8 == 0 -> zero-copy packed path, 2 full grid steps.
    B3 = 1024
    x3 = jax.random.normal(kx3, (B3, 1, H_IN, W_IN), dtype=jnp.float32)
    out3 = jax.block_until_ready(conv_linear_forward(x3, conv_w, conv_b, fc_w, fc_b))
    ref3 = jax.block_until_ready(reference_forward(x3, conv_w, conv_b, fc_w, fc_b))
    assert out3.shape == (B3, 1, H_OUT, FC_OUT), out3.shape
    assert jnp.allclose(out3, ref3, atol=1e-4, rtol=1e-4), "mismatch vs reference (B=1024)"

    print("KERNEL_OK")
</pallas_src>

<mosaic_0001>
module attributes {stable_mosaic.version = 11 : i64} {
  func.func @conv_linear_kernel(%arg0: i32, %arg1: memref<128x144xf32, #tpu.memory_space<vmem>>, %arg2: memref<1x144xf32, #tpu.memory_space<vmem>>, %arg3: memref<1x128xf32, #tpu.memory_space<vmem>>, %arg4: memref<1x144xf32, #tpu.memory_space<vmem>>) attributes {dimension_semantics = [#tpu.dimension_semantics<parallel>], iteration_bounds = array<i64: 1>, scalar_prefetch = 0 : i64, scratch_operands = 0 : i64, tpu.core_type = #tpu.core_type<tc>, window_params = [{pipeline_mode = #tpu.pipeline_mode<synchronous>, transform_indices = @transform_0, window_bounds = array<i64: 128, 144>}, {pipeline_mode = #tpu.pipeline_mode<synchronous>, transform_indices = @transform_1, window_bounds = array<i64: 1, 144>}, {transform_indices = @transform_2, window_bounds = array<i64: 1, 128>}, {transform_indices = @transform_3, window_bounds = array<i64: 1, 144>}]} {
    %c0 = arith.constant 0 : index
    %c0_0 = arith.constant 0 : index
    %0 = vector.load %arg3[%c0, %c0_0] : memref<1x128xf32, #tpu.memory_space<vmem>>, vector<1x128xf32>
    %c0_1 = arith.constant 0 : index
    %c0_2 = arith.constant 0 : index
    %1 = vector.load %arg1[%c0_1, %c0_2] : memref<128x144xf32, #tpu.memory_space<vmem>>, vector<128x144xf32>
    %cst = arith.constant dense<0.000000e+00> : vector<1x144xf32>
    %2 = tpu.matmul %0, %1, %cst {dimension_numbers = #tpu.dot_dimension_numbers<[1], [0], [0], [1], [0, 0, 1, 1], [], []>} : vector<1x128xf32>, vector<128x144xf32>, vector<1x144xf32> -> vector<1x144xf32>
    %c0_3 = arith.constant 0 : index
    %c0_4 = arith.constant 0 : index
    %3 = vector.load %arg2[%c0_3, %c0_4] : memref<1x144xf32, #tpu.memory_space<vmem>>, vector<1x144xf32>
    %4 = arith.addf %2, %3 : vector<1x144xf32>
    %c0_5 = arith.constant 0 : index
    %c0_6 = arith.constant 0 : index
    %5 = vector.load %arg4[%c0_5, %c0_6] : memref<1x144xf32, #tpu.memory_space<vmem>>, vector<1x144xf32>
    tpu.vector_store %arg4[%c0_5, %c0_6], %4 {strides = array<i32>} : memref<1x144xf32, #tpu.memory_space<vmem>>, vector<1x144xf32>,
    return
  }
  func.func @transform_0(%arg0: i32) -> (i32, i32) {
    %c0_i32 = arith.constant 0 : i32
    %c0_i32_0 = arith.constant 0 : i32
    %c0_i32_1 = arith.constant 0 : i32
    return %c0_i32, %c0_i32_0 : i32, i32
  }
  func.func @transform_1(%arg0: i32) -> (i32, i32) {
    %c0_i32 = arith.constant 0 : i32
    %c0_i32_0 = arith.constant 0 : i32
    %c0_i32_1 = arith.constant 0 : i32
    return %c0_i32, %c0_i32_0 : i32, i32
  }
  func.func @transform_2(%arg0: i32) -> (i32, i32) {
    %c0_i32 = arith.constant 0 : i32
    %c0_i32_0 = arith.constant 0 : i32
    return %arg0, %c0_i32 : i32, i32
  }
  func.func @transform_3(%arg0: i32) -> (i32, i32) {
    %c0_i32 = arith.constant 0 : i32
    %c0_i32_0 = arith.constant 0 : i32
    return %arg0, %c0_i32 : i32, i32
  }
}

</mosaic_0001>

<llo_original>
// kernel: tpu_custom_call.1
$region0: #{tpu_custom_call.1}
  #allocation0 [shape = 'u32[]', space=smem, size = 0x4, offset = 0x4, fixed_abs, tag = 'smem constant byte address 0x4 - core index']
  #allocation1 [shape = 'u32[144,128]{1,0:T(1,128)}', space=vmem, size = 0x12000, scoped, tag = 'internal scratch']
  %s0 = inlined_call_operand.vmem [shape: f32[128,144], index: 0, kind: input, shape index: {}]
  %s1 = inlined_call_operand.vmem [shape: f32[1,144], index: 1, kind: input, shape index: {}]
  %s2 = inlined_call_operand.vmem [shape: f32[1,128], index: 2, kind: input, shape index: {}]
  %s3 = inlined_call_operand.hbm [shape: f32[1,144], index: 3, kind: output, shape index: {}]
  %s4 = sld [smem:[#allocation0]]
  $region22: #{tpu_custom_call.1} parent=0
    _
  %s6 = ssub.s32 1, %s4
  %s7 = scalar_select 0, %s6, %s4
  $region1: #{tpu_custom_call.1} parent=0
    #allocation2 [shape = 'u8[1024]{0}', space=vmem, size = 0x400, scoped, tag = 'output window, operand 0, single buffered']
    #allocation3 [shape = 's32[1]{0}', space=sflag, size = 0x4, scoped, tag = 'scoped memory for tpu_custom_call.1']
    %8 = vsyncpa [#allocation3], 0
    // Predicated region
    $region2: #{tpu_custom_call.1} parent=1 // pred_check
      _
    $region3: #{tpu_custom_call.1} parent=1 // pred_check_branch
      %10 = sbr.rel (0) target = $region5
    $region4: #{tpu_custom_call.1} parent=1 // pred_region
      _
    $region5: #{tpu_custom_call.1} parent=1 // pred_fallthru
      _
    // Predicated region
    $region6: #{tpu_custom_call.1} parent=1 // pred_check
      _
    $region7: #{tpu_custom_call.1} parent=1 // pred_check_branch
      %12 = sbr.rel (0) target = $region9
    $region8: #{tpu_custom_call.1} parent=1 // pred_region
      _
    $region9: #{tpu_custom_call.1} parent=1 // pred_fallthru
      _
    // Predicated region
    $region10: #{tpu_custom_call.1} parent=1 // pred_check
      _
    $region11: #{tpu_custom_call.1} parent=1 // pred_check_branch
      %14 = sbr.rel (0) target = $region13
    $region12: #{tpu_custom_call.1} parent=1 // pred_region
      _
    $region13: #{tpu_custom_call.1} parent=1 // pred_fallthru
      _
    %v15 = vld [vmem:[%s2] sm:$0x1]
    %v16 = vld [vmem:[%s0] sm:$0xff]
    %v17 = vld [vmem:[%s0 + $0x8] sm:$0xff]
    %v18 = vld [vmem:[%s0 + $0x10] sm:$0xff]
    %v19 = vld [vmem:[%s0 + $0x18] sm:$0xff]
    %v20 = vld [vmem:[%s0 + $0x20] sm:$0xff]
    %v21 = vld [vmem:[%s0 + $0x28] sm:$0xff]
    %v22 = vld [vmem:[%s0 + $0x30] sm:$0xff]
    %v23 = vld [vmem:[%s0 + $0x38] sm:$0xff]
    %v24 = vld [vmem:[%s0 + $0x40] sm:$0xff]
    %v25 = vld [vmem:[%s0 + $0x48] sm:$0xff]
    %v26 = vld [vmem:[%s0 + $0x50] sm:$0xff]
    %v27 = vld [vmem:[%s0 + $0x58] sm:$0xff]
    %v28 = vld [vmem:[%s0 + $0x60] sm:$0xff]
    %v29 = vld [vmem:[%s0 + $0x68] sm:$0xff]
    %v30 = vld [vmem:[%s0 + $0x70] sm:$0xff]
    %v31 = vld [vmem:[%s0 + $0x78] sm:$0xff]
    %v32 = vld [vmem:[%s0 + $0x80] sm:$0xff]
    %v33 = vld [vmem:[%s0 + $0x88] sm:$0xff]
    %v34 = vld [vmem:[%s0 + $0x90] sm:$0xff]
    %v35 = vld [vmem:[%s0 + $0x98] sm:$0xff]
    %v36 = vld [vmem:[%s0 + $0xa0] sm:$0xff]
    %v37 = vld [vmem:[%s0 + $0xa8] sm:$0xff]
    %v38 = vld [vmem:[%s0 + $0xb0] sm:$0xff]
    %v39 = vld [vmem:[%s0 + $0xb8] sm:$0xff]
    %v40 = vld [vmem:[%s0 + $0xc0] sm:$0xff]
    %v41 = vld [vmem:[%s0 + $0xc8] sm:$0xff]
    %v42 = vld [vmem:[%s0 + $0xd0] sm:$0xff]
    %v43 = vld [vmem:[%s0 + $0xd8] sm:$0xff]
    %v44 = vld [vmem:[%s0 + $0xe0] sm:$0xff]
    %v45 = vld [vmem:[%s0 + $0xe8] sm:$0xff]
    %v46 = vld [vmem:[%s0 + $0xf0] sm:$0xff]
    %v47 = vld [vmem:[%s0 + $0xf8] sm:$0xff]
    %v48 = vld [vmem:[%s1] sm:$0x3]
    %v50 = vlaneseq
    %v51 = vshrl.u32 %v50, 7
    %v52 = vsub.s32 0, %v51
    %v53 = vrot.slane %v48, %v52
    %v54 = vlaneseq
    %v55 = vshrl.u32 %v54, 7
    %v56 = vsub.s32 1, %v55
    %v57 = vrot.slane %v48, %v56
    %60 = vmatprep.subr.mxu0 %v17
    %61 = vmatpush1.msra.mxu0 %v16
    %62 = vmatprep.subr.mxu0 %v19
    %63 = vmatpush1.msra.mxu0 %v18
    %64 = vmatprep.subr.mxu0 %v21
    %65 = vmatpush1.msra.mxu0 %v20
    %66 = vmatprep.subr.mxu0 %v23
    %67 = vmatpush1.msra.mxu0 %v22
    %68 = vmatprep.subr.mxu0 %v25
    %69 = vmatpush1.msra.mxu0 %v24
    %70 = vmatprep.subr.mxu0 %v27
    %71 = vmatpush1.msra.mxu0 %v26
    %72 = vmatprep.subr.mxu0 %v29
    %73 = vmatpush1.msra.mxu0 %v28
    %74 = vmatprep.subr.mxu0 %v31
    %75 = vmatpush1.msra.mxu0 %v30
    %76 = vmatprep.subr.mxu0 %v33
    %77 = vmatpush1.msra.mxu0 %v32
    %78 = vmatprep.subr.mxu0 %v35
    %79 = vmatpush1.msra.mxu0 %v34
    %80 = vmatprep.subr.mxu0 %v37
    %81 = vmatpush1.msra.mxu0 %v36
    %82 = vmatprep.subr.mxu0 %v39
    %83 = vmatpush1.msra.mxu0 %v38
    %84 = vmatprep.subr.mxu0 %v41
    %85 = vmatpush1.msra.mxu0 %v40
    %86 = vmatprep.subr.mxu0 %v43
    %87 = vmatpush1.msra.mxu0 %v42
    %88 = vmatprep.subr.mxu0 %v45
    %89 = vmatpush1.msra.mxu0 %v44
    %90 = vmatprep.subr.mxu0 %v47
    %91 = vmatpush1.msra.mxu0 %v46
    %92 = vmatprep.subr.mxu0 0.0
    %93 = vmatpush1.msra.mxu0 0.0
    %94 = vmatprep.subr.mxu0 0.0
    %95 = vmatpush1.msra.mxu0 0.0
    %96 = vmatprep.subr.mxu0 0.0
    %97 = vmatpush1.msra.mxu0 0.0
    %98 = vmatprep.subr.mxu0 0.0
    %99 = vmatpush1.msra.mxu0 0.0
    %100 = vmatprep.subr.mxu0 0.0
    %101 = vmatpush1.msra.mxu0 0.0
    %102 = vmatprep.subr.mxu0 0.0
    %103 = vmatpush1.msra.mxu0 0.0
    %104 = vmatprep.subr.mxu0 0.0
    %105 = vmatpush1.msra.mxu0 0.0
    %106 = vmatprep.subr.mxu0 0.0
    %107 = vmatpush1.msra.mxu0 0.0
    %108 = vmatprep.subr.mxu0 0.0
    %109 = vmatpush1.msra.mxu0 0.0
    %110 = vmatprep.subr.mxu0 0.0
    %111 = vmatpush1.msra.mxu0 0.0
    %112 = vmatprep.subr.mxu0 0.0
    %113 = vmatpush1.msra.mxu0 0.0
    %114 = vmatprep.subr.mxu0 0.0
    %115 = vmatpush1.msra.mxu0 0.0
    %116 = vmatprep.subr.mxu0 0.0
    %117 = vmatpush1.msra.mxu0 0.0
    %118 = vmatprep.subr.mxu0 0.0
    %119 = vmatpush1.msra.mxu0 0.0
    %120 = vmatprep.subr.mxu0 0.0
    %121 = vmatpush1.msra.mxu0 0.0
    %122 = vmatprep.subr.mxu0 0.0
    %123 = vmatpush1.msra.mxu0 0.0
    %124 = vmatprep.mubr.f32.mxu0 0.0
    %125 = vmatmul.mubr.f32.gmra.mrb[0].mxu0 %v15
    %v126 = vpop.f32.mrb[0].mxu0
    %v127 = vadd.f32 %v53, %v126
    %v128 = vpop.f32.mrb[0].mxu0
    %v129 = vadd.f32 %v57, %v128
    %130 = vdwg.mxu0
    %v133 = vcombine.low %v127, %v129
    %v135 = vunpack.c.l.s4 1966171168
    %v136 = vunpack.c.0.s8 %v135
    %v137 = vlaneseq
    %v138 = vshrl.u32 %v137, 7
    %v139 = vsub.s32 %v136, %v138
    %v140 = vrot.slane %v133, %v139
    %v142 = vunpack.c.l.s4 1966171168
    %v143 = vunpack.c.0.s8 %v142
    %v144 = vlaneseq
    %v145 = vshrl.u32 %v144, 7
    %v146 = vsub.s32 %v143, %v145
    %v147 = vrot.slane %v140, %v146
    %v149 = vlaneseq
    %vm150 = vcmp.ge.s32.totalorder %v149, 0
    %vm151 = vcmp.lt.s32.totalorder %v149, 144
    %vm152 = vmand %vm150, %vm151
    %153 = vst.msk [vmem:[#allocation2] sm:$0x3] %vm152, %v147
    // Predicated region
    $region14: #{tpu_custom_call.1} parent=1 // pred_check
      _
    $region15: #{tpu_custom_call.1} parent=1 // pred_check_branch
      %155 = sbr.rel (0) target = $region17
    $region16: #{tpu_custom_call.1} parent=1 // pred_region
      %s157 = ssub.s32 32, 32
      %158 = vsyncadd [#allocation3], %s157
      %s160 = sshll.u32 [#allocation2], 4
      %s161 = int_to_ptr.vmem [resolvable:$true] %s160
      %163 = dma.vmem_to_hbm [thread:$0]  %s161, 32, %s3, [#allocation3]
    $region17: #{tpu_custom_call.1} parent=1 // pred_fallthru
      _
    // Predicated region
    $region18: #{tpu_custom_call.1} parent=1 // pred_check
      _
    $region19: #{tpu_custom_call.1} parent=1 // pred_check_branch
      %165 = sbr.rel (0) target = $region21
    $region20: #{tpu_custom_call.1} parent=1 // pred_region
      %166 = dma.done [#allocation3], 32
    $region21: #{tpu_custom_call.1} parent=1 // pred_fallthru
      _
    %167 = vsyncpa [#allocation3], 1

</llo_original>
